<compile_context>
chip_gen: v6e
topology: v6e:2x2x1
jax: 0.10.0
libtpu: 0.0.40
codegen_flags: <defaults>
</compile_context>

<pallas_src>
import math

import jax
import jax.numpy as jnp
from jax.experimental import pallas as pl
from jax.experimental.pallas import tpu as pltpu


def build_pe_table(d_model, max_len=4096, dtype=jnp.float32):
    """Init-time equivalent of the PyTorch register_buffer('pe', ...)."""
    assert d_model % 2 == 0, "sinusoidal PE requires even d_model (same as the torch code)"
    position = jnp.arange(max_len, dtype=jnp.float32)[:, None]                # (max_len, 1)
    div_term = jnp.exp(jnp.arange(0, d_model, 2, dtype=jnp.float32)
                       * (-(math.log(10000.0) / d_model)))                    # (d_model/2,)
    angles = position * div_term                                              # (max_len, d_model/2)
    pe = jnp.zeros((max_len, d_model), jnp.float32)
    pe = pe.at[:, 0::2].set(jnp.sin(angles))
    pe = pe.at[:, 1::2].set(jnp.cos(angles))
    return pe.astype(dtype)


def _pe_slice_kernel(pe_ref, o_ref):
    # Pure streaming copy of one row tile; Pallas pipelines HBM->VMEM->HBM around it.
    o_ref[...] = pe_ref[...]


def positional_embedding_forward(x, pe, *, row_tile=512):
    """Forward of PositionalEmbedding: returns pe[None, :x.shape[1]] of shape (1, L, d_model)."""
    L = x.shape[1]
    max_len, d_model = pe.shape
    assert L <= max_len, "sequence length exceeds max_len of the PE table"

    # Lane-density fold: view f consecutive positions as one row of (f*d_model)=128 lanes.
    f = 1
    if (d_model < 128 and 128 % d_model == 0
            and max_len % (8 * (128 // d_model)) == 0):
        f = 128 // d_model
    max_len_f = max_len // f
    d_f = f * d_model
    l_f = pl.cdiv(L, f)                        # folded rows actually needed

    # Row-tile size (in folded rows): multiple of 8 for the (8,128) layout rule.
    if l_f > row_tile and max_len_f % row_tile == 0:
        tl_f = row_tile                        # tiled, pipelined path
    else:
        tl_f = min(max(8, ((l_f + 7) // 8) * 8), max_len_f)   # single block for small L
    grid = pl.cdiv(l_f, tl_f)
    l_f_pad = grid * tl_f                      # padded output rows (sliced back below)
    assert l_f_pad <= max_len_f                # all pe reads stay in bounds

    pe_f = pe.reshape(max_len_f, d_f)          # contiguous reshape, no data movement

    itemsize = jnp.dtype(pe.dtype).itemsize
    out_f = pl.pallas_call(
        _pe_slice_kernel,
        out_shape=jax.ShapeDtypeStruct((l_f_pad, d_f), pe.dtype),
        grid=(grid,),
        in_specs=[pl.BlockSpec((tl_f, d_f), lambda i: (i, 0))],
        out_specs=pl.BlockSpec((tl_f, d_f), lambda i: (i, 0)),
        compiler_params=pltpu.CompilerParams(
            dimension_semantics=("parallel",),  # independent row tiles -> megacore on v7x
        ),
        cost_estimate=pl.CostEstimate(
            flops=0, transcendentals=0,
            bytes_accessed=2 * l_f_pad * d_f * itemsize),
    )(pe_f)

    out = out_f.reshape(l_f_pad * f, d_model)[:L]
    return out[None]                           # (1, L, d_model), matches the torch forward


if __name__ == "__main__":
    # Small shapes consistent with the module: x (B, L, d_model); forward only uses L.
    B, L, d_model, max_len = 2, 8, 32, 4096

    key = jax.random.PRNGKey(0)
    x = jax.random.normal(key, (B, L, d_model), jnp.float32)

    pe = build_pe_table(d_model, max_len)      # init-time buffer (register_buffer equivalent)

    out = positional_embedding_forward(x, pe)
    out = jax.block_until_ready(out)

    ref = pe[None, :L]
    assert out.shape == (1, L, d_model)
    assert jnp.array_equal(out, ref)

    # Ragged-length check: L not a multiple of the fold factor or 8.
    x2 = jnp.zeros((B, 100, d_model), jnp.float32)
    out2 = jax.block_until_ready(positional_embedding_forward(x2, pe))
    assert out2.shape == (1, 100, d_model)
    assert jnp.array_equal(out2, pe[None, :100])

    # Long-sequence (multi-tile, pipelined) check.
    x3 = jnp.zeros((B, 3000, d_model), jnp.float32)
    out3 = jax.block_until_ready(positional_embedding_forward(x3, pe))
    assert out3.shape == (1, 3000, d_model)
    assert jnp.array_equal(out3, pe[None, :3000])

    print("KERNEL_OK")
</pallas_src>

<mosaic_0001>
module attributes {stable_mosaic.version = 11 : i64} {
  func.func @_pe_slice_kernel(%arg0: i32, %arg1: memref<8x128xf32, #tpu.memory_space<vmem>>, %arg2: memref<8x128xf32, #tpu.memory_space<vmem>>) attributes {dimension_semantics = [#tpu.dimension_semantics<parallel>], iteration_bounds = array<i64: 1>, scalar_prefetch = 0 : i64, scratch_operands = 0 : i64, tpu.core_type = #tpu.core_type<tc>, window_params = [{transform_indices = @transform_0, window_bounds = array<i64: 8, 128>}, {transform_indices = @transform_1, window_bounds = array<i64: 8, 128>}]} {
    %c0 = arith.constant 0 : index
    %c0_0 = arith.constant 0 : index
    %0 = vector.load %arg1[%c0, %c0_0] : memref<8x128xf32, #tpu.memory_space<vmem>>, vector<8x128xf32>
    %c0_1 = arith.constant 0 : index
    %c0_2 = arith.constant 0 : index
    %1 = vector.load %arg2[%c0_1, %c0_2] : memref<8x128xf32, #tpu.memory_space<vmem>>, vector<8x128xf32>
    tpu.vector_store %arg2[%c0_1, %c0_2], %0 {strides = array<i32>} : memref<8x128xf32, #tpu.memory_space<vmem>>, vector<8x128xf32>,
    return
  }
  func.func @transform_0(%arg0: i32) -> (i32, i32) {
    %c0_i32 = arith.constant 0 : i32
    %c0_i32_0 = arith.constant 0 : i32
    return %arg0, %c0_i32 : i32, i32
  }
  func.func @transform_1(%arg0: i32) -> (i32, i32) {
    %c0_i32 = arith.constant 0 : i32
    %c0_i32_0 = arith.constant 0 : i32
    return %arg0, %c0_i32 : i32, i32
  }
}

</mosaic_0001>

<llo_original>
// kernel: tpu_custom_call.1
$region0: #{tpu_custom_call.1}
  #allocation0 [shape = 'u32[]', space=smem, size = 0x4, offset = 0x4, fixed_abs, tag = 'smem constant byte address 0x4 - core index']
  #allocation1 [shape = 'u32[144,128]{1,0:T(1,128)}', space=vmem, size = 0x12000, scoped, tag = 'internal scratch']
  %s0 = inlined_call_operand.hbm [shape: f32[1024,128], index: 0, kind: input, shape index: {}]
  %s1 = inlined_call_operand.hbm [shape: f32[8,128], index: 1, kind: output, shape index: {}]
  %s2 = sld [smem:[#allocation0]]
  $region18: #{tpu_custom_call.1} parent=0
    _
  %s4 = ssub.s32 1, %s2
  %s5 = scalar_select 0, %s4, %s2
  $region1: #{tpu_custom_call.1} parent=0
    #allocation2 [shape = 'u8[4096]{0}', space=vmem, size = 0x1000, scoped, tag = 'input window, operand 0, single buffered']
    #allocation3 [shape = 's32[1]{0}', space=sflag, size = 0x4, scoped, tag = 'scoped memory for tpu_custom_call.1']
    #allocation4 [shape = 's32[1]{0}', space=sflag, size = 0x4, scoped, tag = 'scoped memory for tpu_custom_call.1']
    #allocation5 [shape = 'u8[4096]{0}', space=vmem, size = 0x1000, scoped, tag = 'output window, operand 0, single buffered']
    %6 = vsyncpa [#allocation3], 0
    %7 = vsyncpa [#allocation4], 0
    // Predicated region
    $region2: #{tpu_custom_call.1} parent=1 // pred_check
      _
    $region3: #{tpu_custom_call.1} parent=1 // pred_check_branch
      %9 = sbr.rel (0) target = $region5
    $region4: #{tpu_custom_call.1} parent=1 // pred_region
      %s11 = ssub.s32 128, 128
      %12 = vsyncadd [#allocation3], %s11
      %s14 = sshll.u32 [#allocation2], 4
      %s15 = int_to_ptr.vmem [resolvable:$true] %s14
      %17 = dma.hbm_to_vmem [thread:$0]  %s0, 128, %s15, [#allocation3]
    $region5: #{tpu_custom_call.1} parent=1 // pred_fallthru
      _
    // Predicated region
    $region6: #{tpu_custom_call.1} parent=1 // pred_check
      _
    $region7: #{tpu_custom_call.1} parent=1 // pred_check_branch
      %19 = sbr.rel (0) target = $region9
    $region8: #{tpu_custom_call.1} parent=1 // pred_region
      %20 = dma.done [#allocation3], 128
    $region9: #{tpu_custom_call.1} parent=1 // pred_fallthru
      _
    %v21 = vld [vmem:[#allocation2] sm:$0xff]
    %22 = vst [vmem:[#allocation5] sm:$0xff] %v21
    // Predicated region
    $region10: #{tpu_custom_call.1} parent=1 // pred_check
      _
    $region11: #{tpu_custom_call.1} parent=1 // pred_check_branch
      %24 = sbr.rel (0) target = $region13
    $region12: #{tpu_custom_call.1} parent=1 // pred_region
      %s26 = ssub.s32 128, 128
      %27 = vsyncadd [#allocation4], %s26
      %s29 = sshll.u32 [#allocation5], 4
      %s30 = int_to_ptr.vmem [resolvable:$true] %s29
      %32 = dma.vmem_to_hbm [thread:$0]  %s30, 128, %s1, [#allocation4]
    $region13: #{tpu_custom_call.1} parent=1 // pred_fallthru
      _
    // Predicated region
    $region14: #{tpu_custom_call.1} parent=1 // pred_check
      _
    $region15: #{tpu_custom_call.1} parent=1 // pred_check_branch
      %34 = sbr.rel (0) target = $region17
    $region16: #{tpu_custom_call.1} parent=1 // pred_region
      %35 = dma.done [#allocation4], 128
    $region17: #{tpu_custom_call.1} parent=1 // pred_fallthru
      _
    %36 = vsyncpa [#allocation3], 1
    %37 = vsyncpa [#allocation4], 1

</llo_original>
